<compile_context>
chip_gen: v5e
topology: v5e:2x2
jax: 0.10.0
libtpu: 0.0.40
codegen_flags: <defaults>
</compile_context>

<pallas_src>
import functools

import numpy as np
import jax
import jax.numpy as jnp
from jax.experimental import pallas as pl
from jax.experimental.pallas import tpu as pltpu


def _round_up(x, m):
    return ((x + m - 1) // m) * m


# ----------------------------------------------------------------------------
# Fused Pallas kernel: all convs (+ ReLU + max-over-time) + final Linear
# ----------------------------------------------------------------------------
def cnn_text_fused_kernel(emb_ref, w_ref, b_ref, mask_ref, fcw_ref, fcb_ref,
                          out_ref):
    """One batch tile of the whole CNN_Text trunk.

    emb_ref : [TB, T_ext, D]  embeddings (rows >= T are harmless filler)
    w_ref   : [Kmax*D, CoP]   packed conv weights (lane-dense; taps k>=K are 0)
    b_ref   : [1, CoP]        packed conv biases
    mask_ref: [Lp, CoP]       1.0 where time position t is valid for that column's K
    fcw_ref : [CoP, CP]       packed FC weight (zero rows for padded feat columns)
    fcb_ref : [1, CP]         packed FC bias
    out_ref : [TB, CP]        logits (first C columns are real)
    """
    TB, T_ext, D = emb_ref.shape
    KD, CoP = w_ref.shape
    Kmax = KD // D
    Lp = mask_ref.shape[0]

    emb = emb_ref[...]                                         # [TB, T_ext, D]

    # im2col: window of Kmax consecutive embedding rows per output position.
    col = jnp.concatenate([emb[:, k:k + Lp, :] for k in range(Kmax)], axis=2)
    col2d = col.reshape(TB * Lp, KD)                           # [TB*Lp, Kmax*D]

    # Every kernel size's conv in ONE MXU matmul (contraction Kmax*D, N = CoP).
    acc = jnp.dot(col2d, w_ref[...],
                  preferred_element_type=jnp.float32)          # [TB*Lp, CoP]
    acc = jnp.maximum(acc + b_ref[...], 0.0)                   # bias + ReLU (f32 epilogue)
    acc = acc.reshape(TB, Lp, CoP) * mask_ref[...]             # kill out-of-range positions
    feats = jnp.max(acc, axis=1)                               # max over time -> [TB, CoP]

    # Final Linear folded in; pooled feats never leave VMEM.
    out_ref[...] = (jnp.dot(feats, fcw_ref[...],
                            preferred_element_type=jnp.float32)
                    + fcb_ref[...])


# ----------------------------------------------------------------------------
# One-time parameter packing (hoisted out of the per-call forward)
# ----------------------------------------------------------------------------
def pack_params(params, kernel_sizes, kernel_num, num_class):
    """Pack per-kernel-size conv weights into one lane-dense weight/bias and
    the FC layer into lane-dense (128-multiple) shapes.  Done ONCE."""
    Ks = tuple(kernel_sizes)
    Kmax = max(Ks)
    D = params["embed"].shape[1]
    Co = kernel_num
    C = num_class
    Co_total = len(Ks) * Co
    CoP = _round_up(Co_total, 128)                  # lane-dense conv output width
    CP = _round_up(C, 128)                          # lane-dense logits width

    w_packed = jnp.zeros((Kmax, D, CoP), jnp.float32)
    b_packed = jnp.zeros((1, CoP), jnp.float32)
    for g, K in enumerate(Ks):
        w_packed = w_packed.at[:K, :, g * Co:(g + 1) * Co].set(
            params[f"conv_w_{K}"].astype(jnp.float32))
        b_packed = b_packed.at[0, g * Co:(g + 1) * Co].set(
            params[f"conv_b_{K}"].astype(jnp.float32))
    w_packed = w_packed.reshape(Kmax * D, CoP)

    fcw = jnp.zeros((CoP, CP), jnp.float32).at[:Co_total, :C].set(
        params["fc_w"].astype(jnp.float32))
    fcb = jnp.zeros((1, CP), jnp.float32).at[0, :C].set(
        params["fc_b"].astype(jnp.float32))

    return {
        "embed": params["embed"].astype(jnp.float32),
        "conv_w": w_packed,          # [Kmax*D, CoP]
        "conv_b": b_packed,          # [1, CoP]
        "fc_w": fcw,                 # [CoP, CP]
        "fc_b": fcb,                 # [1, CP]
    }


# ----------------------------------------------------------------------------
# Wrapper: batch-gridded pallas_call
# ----------------------------------------------------------------------------
def _pick_block_b(B, T_ext, D, Kmax, Lp, CoP):
    """Batch-tile size: big enough to amortize per-step overhead, small enough
    that (double-buffered emb tile + im2col matrix + activations) stays well
    under the 32 MiB scoped-VMEM budget that is safe on v7x."""
    bytes_per_row = 4 * (2 * T_ext * D + Lp * Kmax * D + 2 * Lp * CoP)
    budget = 8 * 1024 * 1024
    bb = int(min(128, max(8, budget // max(bytes_per_row, 1))))
    if B <= bb:
        return B                      # single block covers the whole small batch
    return max(8, (bb // 8) * 8)      # sublane-aligned batch tile


def cnn_text_forward(x_ids, packed, *, kernel_sizes, kernel_num, num_class):
    """x_ids: [B, L] int32 token ids. Returns logits [B, C] float32."""
    Ks = tuple(kernel_sizes)
    Kmax, Kmin = max(Ks), min(Ks)
    Co = kernel_num
    C = num_class
    B, L = x_ids.shape
    D = packed["embed"].shape[1]
    CoP = packed["conv_w"].shape[1]
    CP = packed["fc_b"].shape[1]

    T = L + 2                          # after the two pad tokens (id 1)
    Lp = T - Kmin + 1                  # longest conv output length over all Ks
    T_ext = T + (Kmax - Kmin)          # so every Kmax window stays in bounds

    # --- pad token id 1 at both ends (torch.ones(...).type(LongTensor)).
    # The extra (Kmax - Kmin) trailing positions are only ever consumed by
    # zero-filled weight taps or masked output positions, so reusing the pad
    # token there is exact and avoids a separate f32 pad of emb.
    ids = jnp.pad(x_ids.astype(jnp.int32), ((0, 0), (1, 1 + (Kmax - Kmin))),
                  constant_values=1)                           # [B, T_ext]

    # --- embedding lookup: plain-JAX gather (table generally exceeds VMEM) ---
    # TODO(synk): fuse the gather into the kernel (scalar-prefetched ids + DMA
    # gather from the HBM table) to save the emb HBM round trip; per-token DMAs
    # are tiny for small D, so XLA's fused gather is kept for now.
    emb = packed["embed"][ids]                                 # [B, T_ext, D] f32

    # --- static per-column time-validity mask [Lp, CoP] (trace-time constant) -
    valid_len = np.zeros((CoP,), np.float32)
    for g, K in enumerate(Ks):
        valid_len[g * Co:(g + 1) * Co] = T - K + 1
    mask = jnp.asarray(
        np.arange(Lp, dtype=np.float32)[:, None] < valid_len[None, :],
        dtype=jnp.float32)

    # TODO(synk): nn.Dropout is identity in eval mode; train-mode dropout mask
    # (scaled Bernoulli on the pooled feats) is not applied here.

    block_b = _pick_block_b(B, T_ext, D, Kmax, Lp, CoP)
    grid = (pl.cdiv(B, block_b),)

    logits_padded = pl.pallas_call(
        cnn_text_fused_kernel,
        out_shape=jax.ShapeDtypeStruct((B, CP), jnp.float32),
        grid=grid,
        in_specs=[
            pl.BlockSpec((block_b, T_ext, D), lambda i: (i, 0, 0)),   # pipelined
            pl.BlockSpec((Kmax * D, CoP), lambda i: (0, 0)),          # VMEM-resident
            pl.BlockSpec((1, CoP), lambda i: (0, 0)),
            pl.BlockSpec((Lp, CoP), lambda i: (0, 0)),
            pl.BlockSpec((CoP, CP), lambda i: (0, 0)),
            pl.BlockSpec((1, CP), lambda i: (0, 0)),
        ],
        out_specs=pl.BlockSpec((block_b, CP), lambda i: (i, 0)),
        compiler_params=pltpu.CompilerParams(
            dimension_semantics=("parallel",),        # megacore sharding on v7x
            vmem_limit_bytes=32 * 1024 * 1024),       # explicit, v7x-safe budget
    )(emb, packed["conv_w"], packed["conv_b"], mask,
      packed["fc_w"], packed["fc_b"])

    return logits_padded[:, :C]


# ----------------------------------------------------------------------------
# Pure-JAX reference (independent math path) for a correctness check
# ----------------------------------------------------------------------------
def reference_forward(x_ids, params, kernel_sizes):
    B = x_ids.shape[0]
    pad = jnp.ones((B, 1), dtype=jnp.int32)
    ids = jnp.concatenate([pad, x_ids.astype(jnp.int32), pad], axis=1)
    emb = params["embed"][ids]                                # [B, T, D]
    T = emb.shape[1]
    pooled = []
    for K in kernel_sizes:
        w = params[f"conv_w_{K}"]                             # [K, D, Co]
        Lp = T - K + 1
        conv = jnp.zeros((B, Lp, w.shape[-1]), jnp.float32) + params[f"conv_b_{K}"]
        for k in range(K):
            conv = conv + jnp.einsum("btd,dc->btc", emb[:, k:k + Lp, :], w[k])
        pooled.append(jnp.max(jnp.maximum(conv, 0.0), axis=1))
    feats = jnp.concatenate(pooled, axis=1)
    return feats @ params["fc_w"] + params["fc_b"]


# ----------------------------------------------------------------------------
# Deterministic parameter init + demo
# ----------------------------------------------------------------------------
def init_params(key, vocab_size, embed_dim, num_class, kernel_num, kernel_sizes):
    keys = jax.random.split(key, 3 + 2 * len(kernel_sizes))
    params = {}
    params["embed"] = 0.1 * jax.random.normal(
        keys[0], (vocab_size, embed_dim), dtype=jnp.float32)
    for i, K in enumerate(kernel_sizes):
        # PyTorch conv weight is [Co, Ci=1, K, D]; stored here as [K, D, Co].
        params[f"conv_w_{K}"] = 0.1 * jax.random.normal(
            keys[1 + 2 * i], (K, embed_dim, kernel_num), dtype=jnp.float32)
        params[f"conv_b_{K}"] = 0.1 * jax.random.normal(
            keys[2 + 2 * i], (kernel_num,), dtype=jnp.float32)
    F_dim = len(kernel_sizes) * kernel_num
    params["fc_w"] = 0.1 * jax.random.normal(
        keys[-2], (F_dim, num_class), dtype=jnp.float32)
    params["fc_b"] = 0.1 * jax.random.normal(
        keys[-1], (num_class,), dtype=jnp.float32)
    return params


if __name__ == "__main__":
    # Small, forward-consistent sizes.
    vocab_size = 50
    embed_dim = 32      # D
    num_class = 4       # C
    kernel_num = 8      # Co
    kernel_sizes = (3, 4, 5)
    batch = 2
    seq_len = 8         # -> T = 10 after padding (>= max kernel size)

    key = jax.random.PRNGKey(0)
    k_param, k_data = jax.random.split(key)
    params = init_params(k_param, vocab_size, embed_dim, num_class,
                         kernel_num, kernel_sizes)
    x_ids = jax.random.randint(k_data, (batch, seq_len), 0, vocab_size,
                               dtype=jnp.int32)

    # One-time packing outside the hot path.
    packed = jax.tree_util.tree_map(
        jax.block_until_ready,
        pack_params(params, kernel_sizes, kernel_num, num_class))

    fwd = jax.jit(functools.partial(cnn_text_forward,
                                    kernel_sizes=kernel_sizes,
                                    kernel_num=kernel_num,
                                    num_class=num_class))
    logits = fwd(x_ids, packed)
    jax.block_until_ready(logits)

    assert logits.shape == (batch, num_class)
    assert logits.dtype == jnp.float32

    ref = reference_forward(x_ids, params, kernel_sizes)
    if not jnp.allclose(logits, ref, atol=1e-2, rtol=1e-2):
        raise AssertionError(f"mismatch vs reference:\n{logits}\n{ref}")

    print("KERNEL_OK")
</pallas_src>

<mosaic_0001>
module attributes {stable_mosaic.version = 11 : i64} {
  func.func @cnn_text_fused_kernel(%arg0: i32, %arg1: memref<2x12x32xf32, #tpu.memory_space<vmem>>, %arg2: memref<160x128xf32, #tpu.memory_space<vmem>>, %arg3: memref<1x128xf32, #tpu.memory_space<vmem>>, %arg4: memref<8x128xf32, #tpu.memory_space<vmem>>, %arg5: memref<128x128xf32, #tpu.memory_space<vmem>>, %arg6: memref<1x128xf32, #tpu.memory_space<vmem>>, %arg7: memref<2x128xf32, #tpu.memory_space<vmem>>) attributes {dimension_semantics = [#tpu.dimension_semantics<parallel>], iteration_bounds = array<i64: 1>, scalar_prefetch = 0 : i64, scratch_operands = 0 : i64, tpu.core_type = #tpu.core_type<tc>, window_params = [{transform_indices = @transform_0, window_bounds = array<i64: 2, 12, 32>}, {pipeline_mode = #tpu.pipeline_mode<synchronous>, transform_indices = @transform_1, window_bounds = array<i64: 160, 128>}, {pipeline_mode = #tpu.pipeline_mode<synchronous>, transform_indices = @transform_2, window_bounds = array<i64: 1, 128>}, {pipeline_mode = #tpu.pipeline_mode<synchronous>, transform_indices = @transform_3, window_bounds = array<i64: 8, 128>}, {pipeline_mode = #tpu.pipeline_mode<synchronous>, transform_indices = @transform_4, window_bounds = array<i64: 128, 128>}, {pipeline_mode = #tpu.pipeline_mode<synchronous>, transform_indices = @transform_5, window_bounds = array<i64: 1, 128>}, {transform_indices = @transform_6, window_bounds = array<i64: 2, 128>}]} {
    %c0 = arith.constant 0 : index
    %c0_0 = arith.constant 0 : index
    %c0_1 = arith.constant 0 : index
    %0 = vector.load %arg1[%c0, %c0_0, %c0_1] : memref<2x12x32xf32, #tpu.memory_space<vmem>>, vector<2x12x32xf32>
    %1 = vector.extract_strided_slice %0 {offsets = [0, 0, 0], sizes = [2, 8, 32], strides = [1, 1, 1]} : vector<2x12x32xf32> to vector<2x8x32xf32>
    %2 = vector.extract_strided_slice %0 {offsets = [0, 1, 0], sizes = [2, 8, 32], strides = [1, 1, 1]} : vector<2x12x32xf32> to vector<2x8x32xf32>
    %3 = vector.extract_strided_slice %0 {offsets = [0, 2, 0], sizes = [2, 8, 32], strides = [1, 1, 1]} : vector<2x12x32xf32> to vector<2x8x32xf32>
    %4 = vector.extract_strided_slice %0 {offsets = [0, 3, 0], sizes = [2, 8, 32], strides = [1, 1, 1]} : vector<2x12x32xf32> to vector<2x8x32xf32>
    %5 = vector.extract_strided_slice %0 {offsets = [0, 4, 0], sizes = [2, 8, 32], strides = [1, 1, 1]} : vector<2x12x32xf32> to vector<2x8x32xf32>
    %6 = tpu.concatenate %1, %2, %3, %4, %5 in 2 : vector<2x8x32xf32>, vector<2x8x32xf32>, vector<2x8x32xf32>, vector<2x8x32xf32>, vector<2x8x32xf32> -> vector<2x8x160xf32>
    %7 = vector.shape_cast %6 : vector<2x8x160xf32> to vector<16x160xf32>
    %c0_2 = arith.constant 0 : index
    %c0_3 = arith.constant 0 : index
    %8 = vector.load %arg2[%c0_2, %c0_3] : memref<160x128xf32, #tpu.memory_space<vmem>>, vector<160x128xf32>
    %cst = arith.constant dense<0.000000e+00> : vector<16x128xf32>
    %9 = tpu.matmul %7, %8, %cst {dimension_numbers = #tpu.dot_dimension_numbers<[1], [0], [0], [1], [0, 0, 1, 1], [], []>} : vector<16x160xf32>, vector<160x128xf32>, vector<16x128xf32> -> vector<16x128xf32>
    %c0_4 = arith.constant 0 : index
    %c0_5 = arith.constant 0 : index
    %10 = vector.load %arg3[%c0_4, %c0_5] : memref<1x128xf32, #tpu.memory_space<vmem>>, vector<1x128xf32>
    %11 = vector.broadcast %10 : vector<1x128xf32> to vector<16x128xf32>
    %12 = arith.addf %9, %11 : vector<16x128xf32>
    %cst_6 = arith.constant 0.000000e+00 : f32
    %13 = vector.broadcast %cst_6 : f32 to vector<16x128xf32>
    %14 = arith.maximumf %12, %13 : vector<16x128xf32>
    %15 = vector.shape_cast %14 : vector<16x128xf32> to vector<2x8x128xf32>
    %c0_7 = arith.constant 0 : index
    %c0_8 = arith.constant 0 : index
    %16 = vector.load %arg4[%c0_7, %c0_8] : memref<8x128xf32, #tpu.memory_space<vmem>>, vector<8x128xf32>
    %17 = vector.shape_cast %16 : vector<8x128xf32> to vector<1x8x128xf32>
    %18 = vector.broadcast %17 : vector<1x8x128xf32> to vector<2x8x128xf32>
    %19 = arith.mulf %15, %18 : vector<2x8x128xf32>
    %cst_9 = arith.constant dense<0xFF800000> : vector<2x128xf32>
    %20 = vector.multi_reduction <maximumf>, %19, %cst_9 [1] : vector<2x8x128xf32> to vector<2x128xf32>
    %c0_10 = arith.constant 0 : index
    %c0_11 = arith.constant 0 : index
    %21 = vector.load %arg5[%c0_10, %c0_11] : memref<128x128xf32, #tpu.memory_space<vmem>>, vector<128x128xf32>
    %cst_12 = arith.constant dense<0.000000e+00> : vector<2x128xf32>
    %22 = tpu.matmul %20, %21, %cst_12 {dimension_numbers = #tpu.dot_dimension_numbers<[1], [0], [0], [1], [0, 0, 1, 1], [], []>} : vector<2x128xf32>, vector<128x128xf32>, vector<2x128xf32> -> vector<2x128xf32>
    %c0_13 = arith.constant 0 : index
    %c0_14 = arith.constant 0 : index
    %23 = vector.load %arg6[%c0_13, %c0_14] : memref<1x128xf32, #tpu.memory_space<vmem>>, vector<1x128xf32>
    %24 = vector.broadcast %23 : vector<1x128xf32> to vector<2x128xf32>
    %25 = arith.addf %22, %24 : vector<2x128xf32>
    %c0_15 = arith.constant 0 : index
    %c0_16 = arith.constant 0 : index
    %26 = vector.load %arg7[%c0_15, %c0_16] : memref<2x128xf32, #tpu.memory_space<vmem>>, vector<2x128xf32>
    tpu.vector_store %arg7[%c0_15, %c0_16], %25 {strides = array<i32>} : memref<2x128xf32, #tpu.memory_space<vmem>>, vector<2x128xf32>,
    return
  }
  func.func @transform_0(%arg0: i32) -> (i32, i32, i32) {
    %c0_i32 = arith.constant 0 : i32
    %c0_i32_0 = arith.constant 0 : i32
    %c0_i32_1 = arith.constant 0 : i32
    return %arg0, %c0_i32, %c0_i32_0 : i32, i32, i32
  }
  func.func @transform_1(%arg0: i32) -> (i32, i32) {
    %c0_i32 = arith.constant 0 : i32
    %c0_i32_0 = arith.constant 0 : i32
    %c0_i32_1 = arith.constant 0 : i32
    return %c0_i32, %c0_i32_0 : i32, i32
  }
  func.func @transform_2(%arg0: i32) -> (i32, i32) {
    %c0_i32 = arith.constant 0 : i32
    %c0_i32_0 = arith.constant 0 : i32
    %c0_i32_1 = arith.constant 0 : i32
    return %c0_i32, %c0_i32_0 : i32, i32
  }
  func.func @transform_3(%arg0: i32) -> (i32, i32) {
    %c0_i32 = arith.constant 0 : i32
    %c0_i32_0 = arith.constant 0 : i32
    %c0_i32_1 = arith.constant 0 : i32
    return %c0_i32, %c0_i32_0 : i32, i32
  }
  func.func @transform_4(%arg0: i32) -> (i32, i32) {
    %c0_i32 = arith.constant 0 : i32
    %c0_i32_0 = arith.constant 0 : i32
    %c0_i32_1 = arith.constant 0 : i32
    return %c0_i32, %c0_i32_0 : i32, i32
  }
  func.func @transform_5(%arg0: i32) -> (i32, i32) {
    %c0_i32 = arith.constant 0 : i32
    %c0_i32_0 = arith.constant 0 : i32
    %c0_i32_1 = arith.constant 0 : i32
    return %c0_i32, %c0_i32_0 : i32, i32
  }
  func.func @transform_6(%arg0: i32) -> (i32, i32) {
    %c0_i32 = arith.constant 0 : i32
    %c0_i32_0 = arith.constant 0 : i32
    return %arg0, %c0_i32 : i32, i32
  }
}

</mosaic_0001>

<llo_original>
// kernel: cnn_text_forward.1
$region0: #{cnn_text_forward.1}
  #allocation0 [shape = 'u32[]', space=smem, size = 0x4, offset = 0x4, fixed_abs, tag = 'smem constant byte address 0x4 - core index']
  #allocation1 [shape = 'u32[72,128]{1,0:T(1,128)}', space=vmem, size = 0x9000, scoped, tag = 'internal scratch']
  %s0 = inlined_call_operand.vmem [shape: f32[2,12,32], index: 0, kind: input, shape index: {}]
  %s1 = inlined_call_operand.vmem [shape: f32[160,128], index: 1, kind: input, shape index: {}]
  %s2 = inlined_call_operand.vmem [shape: f32[1,128], index: 2, kind: input, shape index: {}]
  %s3 = inlined_call_operand.vmem [shape: f32[8,128], index: 3, kind: input, shape index: {}]
  %s4 = inlined_call_operand.vmem [shape: f32[128,128], index: 4, kind: input, shape index: {}]
  %s5 = inlined_call_operand.vmem [shape: f32[1,128], index: 5, kind: input, shape index: {}]
  %s6 = inlined_call_operand.hbm [shape: f32[2,128], index: 6, kind: output, shape index: {}]
  %s7 = sld [smem:[#allocation0]]
  $region34: #{cnn_text_forward.1} parent=0
    _
  %s9 = ssub.s32 1, %s7
  %s10 = scalar_select 0, %s9, %s7
  $region1: #{cnn_text_forward.1} parent=0
    #allocation2 [shape = 'u8[1024]{0}', space=vmem, size = 0x400, scoped, tag = 'output window, operand 0, single buffered']
    #allocation3 [shape = 's32[1]{0}', space=sflag, size = 0x4, scoped, tag = 'scoped memory for cnn_text_forward.1']
    %11 = vsyncpa [#allocation3], 0
    // Predicated region
    $region2: #{cnn_text_forward.1} parent=1 // pred_check
      _
    $region3: #{cnn_text_forward.1} parent=1 // pred_check_branch
      %13 = sbr.rel (0) target = $region5
    $region4: #{cnn_text_forward.1} parent=1 // pred_region
      _
    $region5: #{cnn_text_forward.1} parent=1 // pred_fallthru
      _
    // Predicated region
    $region6: #{cnn_text_forward.1} parent=1 // pred_check
      _
    $region7: #{cnn_text_forward.1} parent=1 // pred_check_branch
      %15 = sbr.rel (0) target = $region9
    $region8: #{cnn_text_forward.1} parent=1 // pred_region
      _
    $region9: #{cnn_text_forward.1} parent=1 // pred_fallthru
      _
    // Predicated region
    $region10: #{cnn_text_forward.1} parent=1 // pred_check
      _
    $region11: #{cnn_text_forward.1} parent=1 // pred_check_branch
      %17 = sbr.rel (0) target = $region13
    $region12: #{cnn_text_forward.1} parent=1 // pred_region
      _
    $region13: #{cnn_text_forward.1} parent=1 // pred_fallthru
      _
    // Predicated region
    $region14: #{cnn_text_forward.1} parent=1 // pred_check
      _
    $region15: #{cnn_text_forward.1} parent=1 // pred_check_branch
      %19 = sbr.rel (0) target = $region17
    $region16: #{cnn_text_forward.1} parent=1 // pred_region
      _
    $region17: #{cnn_text_forward.1} parent=1 // pred_fallthru
      _
    // Predicated region
    $region18: #{cnn_text_forward.1} parent=1 // pred_check
      _
    $region19: #{cnn_text_forward.1} parent=1 // pred_check_branch
      %21 = sbr.rel (0) target = $region21
    $region20: #{cnn_text_forward.1} parent=1 // pred_region
      _
    $region21: #{cnn_text_forward.1} parent=1 // pred_fallthru
      _
    // Predicated region
    $region22: #{cnn_text_forward.1} parent=1 // pred_check
      _
    $region23: #{cnn_text_forward.1} parent=1 // pred_check_branch
      %23 = sbr.rel (0) target = $region25
    $region24: #{cnn_text_forward.1} parent=1 // pred_region
      _
    $region25: #{cnn_text_forward.1} parent=1 // pred_fallthru
      _
    %v24 = vld [vmem:[%s0] sm:$0xff]
    %v25 = vld [vmem:[%s0 + $0x8] sm:$0xf]
    %v26 = vld [vmem:[%s0 + $0x10] sm:$0xff]
    %v27 = vld [vmem:[%s0 + $0x18] sm:$0xf]
    %vm32 = vcmask 1046528
    %v33 = vrot.slane %v24, 1
    %v34 = vrot.slane %v25, 1
    %v35 = vsel %vm32, %v33, %v34
    %v36 = vrot.slane %v26, 1
    %v37 = vrot.slane %v27, 1
    %v38 = vsel %vm32, %v36, %v37
    %39 = vrot.lane.b32.xlu0 %v35, 32
    %v40 = vpop.permute.xlu0 %39
    %41 = vrot.lane.b32.xlu0 %v38, 32
    %v42 = vpop.permute.xlu0 %41
    %vm45 = vcmask 1045504
    %v46 = vrot.slane %v24, 2
    %v47 = vrot.slane %v25, 2
    %v48 = vsel %vm45, %v46, %v47
    %v49 = vrot.slane %v26, 2
    %v50 = vrot.slane %v27, 2
    %v51 = vsel %vm45, %v49, %v50
    %52 = vrot.lane.b32.xlu0 %v48, 64
    %v53 = vpop.permute.xlu0 %52
    %54 = vrot.lane.b32.xlu0 %v51, 64
    %v55 = vpop.permute.xlu0 %54
    %vm58 = vcmask 1044480
    %v59 = vrot.slane %v24, 3
    %v60 = vrot.slane %v25, 3
    %v61 = vsel %vm58, %v59, %v60
    %v62 = vrot.slane %v26, 3
    %v63 = vrot.slane %v27, 3
    %v64 = vsel %vm58, %v62, %v63
    %65 = vrot.lane.b32.xlu0 %v61, 96
    %v66 = vpop.permute.xlu0 %65
    %67 = vrot.lane.b32.xlu0 %v64, 96
    %v68 = vpop.permute.xlu0 %67
    %vm71 = vcmask 1043456
    %v72 = vrot.slane %v24, 4
    %v73 = vrot.slane %v25, 4
    %v74 = vsel %vm71, %v72, %v73
    %v75 = vrot.slane %v26, 4
    %v76 = vrot.slane %v27, 4
    %v77 = vsel %vm71, %v75, %v76
    %vm78 = vcmask 261120
    %v79 = vsel %vm78, %v24, %v40
    %v80 = vsel %vm78, %v26, %v42
    %vm81 = vcmask 523264
    %v82 = vsel %vm81, %v79, %v53
    %v83 = vsel %vm81, %v80, %v55
    %vm84 = vcmask 785408
    %v85 = vsel %vm84, %v82, %v66
    %v86 = vsel %vm84, %v83, %v68
    %v87 = vld [vmem:[%s1] sm:$0xff]
    %v88 = vld [vmem:[%s1 + $0x8] sm:$0xff]
    %v89 = vld [vmem:[%s1 + $0x10] sm:$0xff]
    %v90 = vld [vmem:[%s1 + $0x18] sm:$0xff]
    %v91 = vld [vmem:[%s1 + $0x20] sm:$0xff]
    %v92 = vld [vmem:[%s1 + $0x28] sm:$0xff]
    %v93 = vld [vmem:[%s1 + $0x30] sm:$0xff]
    %v94 = vld [vmem:[%s1 + $0x38] sm:$0xff]
    %v95 = vld [vmem:[%s1 + $0x40] sm:$0xff]
    %v96 = vld [vmem:[%s1 + $0x48] sm:$0xff]
    %v97 = vld [vmem:[%s1 + $0x50] sm:$0xff]
    %v98 = vld [vmem:[%s1 + $0x58] sm:$0xff]
    %v99 = vld [vmem:[%s1 + $0x60] sm:$0xff]
    %v100 = vld [vmem:[%s1 + $0x68] sm:$0xff]
    %v101 = vld [vmem:[%s1 + $0x70] sm:$0xff]
    %v102 = vld [vmem:[%s1 + $0x78] sm:$0xff]
    %v103 = vld [vmem:[%s1 + $0x80] sm:$0xff]
    %v104 = vld [vmem:[%s1 + $0x88] sm:$0xff]
    %v105 = vld [vmem:[%s1 + $0x90] sm:$0xff]
    %v106 = vld [vmem:[%s1 + $0x98] sm:$0xff]
    %v107 = vld [vmem:[%s2] sm:$0x1]
    %v109 = vperm.slane %v107, 0
    %v111 = vsel %vm78, %v74, 0
    %v113 = vsel %vm78, %v77, 0
    %115 = vmatpush.msra.mxu0 %v102
    %116 = vmatpush.msra.mxu0 %v101
    %117 = vmatpush.msra.mxu0 %v100
    %118 = vmatpush.msra.mxu0 %v99
    %119 = vmatpush.msra.mxu0 %v98
    %120 = vmatpush.msra.mxu0 %v97
    %121 = vmatpush.msra.mxu0 %v96
    %122 = vmatpush.msra.mxu0 %v95
    %123 = vmatpush.msra.mxu0 %v94
    %124 = vmatpush.msra.mxu0 %v93
    %125 = vmatpush.msra.mxu0 %v92
    %126 = vmatpush.msra.mxu0 %v91
    %127 = vmatpush.msra.mxu0 %v90
    %128 = vmatpush.msra.mxu0 %v89
    %129 = vmatpush.msra.mxu0 %v88
    %130 = vmatpush.msra.mxu0 %v87
    %131 = vmatmul.f32.gmra.mxu0 %v85
    %v132 = vpop.f32.mrf.mxu0
    %v133 = vadd.f32 %v109, %v132
    %134 = vmatmul.f32.gmra.mxu0 %v86
    %v135 = vpop.f32.mrf.mxu0
    %v136 = vadd.f32 %v109, %v135
    %137 = vdwg.mxu0
    %138 = vmatpush.msra.mxu0 0.0
    %139 = vmatpush.msra.mxu0 0.0
    %140 = vmatpush.msra.mxu0 0.0
    %141 = vmatpush.msra.mxu0 0.0
    %142 = vmatpush.msra.mxu0 0.0
    %143 = vmatpush.msra.mxu0 0.0
    %144 = vmatpush.msra.mxu0 0.0
    %145 = vmatpush.msra.mxu0 0.0
    %146 = vmatpush.msra.mxu0 0.0
    %147 = vmatpush.msra.mxu0 0.0
    %148 = vmatpush.msra.mxu0 0.0
    %149 = vmatpush.msra.mxu0 0.0
    %150 = vmatpush.msra.mxu0 %v106
    %151 = vmatpush.msra.mxu0 %v105
    %152 = vmatpush.msra.mxu0 %v104
    %153 = vmatpush.msra.mxu0 %v103
    %154 = vmatmul.f32.gmra.mxu0 %v111
    %v155 = vpop.f32.mrf.mxu0
    %v156 = vadd.f32 %v133, %v155
    %157 = vmatmul.f32.gmra.mxu0 %v113
    %v158 = vpop.f32.mrf.mxu0
    %v159 = vadd.f32 %v136, %v158
    %160 = vdwg.mxu0
    %v161 = vmax.f32 %v156, 0.0
    %v162 = vmax.f32 %v159, 0.0
    %v163 = vld [vmem:[%s3] sm:$0xff]
    %v164 = vmul.f32 %v161, %v163
    %v165 = vmul.f32 %v162, %v163
    %v166 = vrot.slane %v164, 4
    %v167 = vmax.f32 %v164, %v166
    %v168 = vrot.slane %v167, 2
    %v169 = vmax.f32 %v167, %v168
    %v170 = vrot.slane %v169, 1
    %v171 = vmax.f32 %v169, %v170
    %v172 = vrot.slane %v165, 4
    %v173 = vmax.f32 %v165, %v172
    %v174 = vrot.slane %v173, 2
    %v175 = vmax.f32 %v173, %v174
    %v176 = vrot.slane %v175, 1
    %v177 = vmax.f32 %v175, %v176
    %v178 = vld [vmem:[%s4] sm:$0xff]
    %v179 = vld [vmem:[%s4 + $0x8] sm:$0xff]
    %v180 = vld [vmem:[%s4 + $0x10] sm:$0xff]
    %v181 = vld [vmem:[%s4 + $0x18] sm:$0xff]
    %v182 = vld [vmem:[%s4 + $0x20] sm:$0xff]
    %v183 = vld [vmem:[%s4 + $0x28] sm:$0xff]
    %v184 = vld [vmem:[%s4 + $0x30] sm:$0xff]
    %v185 = vld [vmem:[%s4 + $0x38] sm:$0xff]
    %v186 = vld [vmem:[%s4 + $0x40] sm:$0xff]
    %v187 = vld [vmem:[%s4 + $0x48] sm:$0xff]
    %v188 = vld [vmem:[%s4 + $0x50] sm:$0xff]
    %v189 = vld [vmem:[%s4 + $0x58] sm:$0xff]
    %v190 = vld [vmem:[%s4 + $0x60] sm:$0xff]
    %v191 = vld [vmem:[%s4 + $0x68] sm:$0xff]
    %v192 = vld [vmem:[%s4 + $0x70] sm:$0xff]
    %v193 = vld [vmem:[%s4 + $0x78] sm:$0xff]
    %v194 = vld [vmem:[%s5] sm:$0x1]
    %v196 = vperm.slane %v194, 0
    %vm200 = vcmask 1041409
    %v201 = vsel %vm200, %v177, %v171
    %203 = vmatpush.msra.mxu0 %v193
    %204 = vmatpush.msra.mxu0 %v192
    %205 = vmatpush.msra.mxu0 %v191
    %206 = vmatpush.msra.mxu0 %v190
    %207 = vmatpush.msra.mxu0 %v189
    %208 = vmatpush.msra.mxu0 %v188
    %209 = vmatpush.msra.mxu0 %v187
    %210 = vmatpush.msra.mxu0 %v186
    %211 = vmatpush.msra.mxu0 %v185
    %212 = vmatpush.msra.mxu0 %v184
    %213 = vmatpush.msra.mxu0 %v183
    %214 = vmatpush.msra.mxu0 %v182
    %215 = vmatpush.msra.mxu0 %v181
    %216 = vmatpush.msra.mxu0 %v180
    %217 = vmatpush.msra.mxu0 %v179
    %218 = vmatpush.msra.mxu0 %v178
    %219 = vmatmul.f32.gmra.mxu0 %v201
    %v220 = vpop.f32.mrf.mxu0
    %v221 = vadd.f32 %v196, %v220
    %222 = vdwg.mxu0
    %223 = vst [vmem:[#allocation2] sm:$0x3] %v221
    // Predicated region
    $region26: #{cnn_text_forward.1} parent=1 // pred_check
      _
    $region27: #{cnn_text_forward.1} parent=1 // pred_check_branch
      %225 = sbr.rel (0) target = $region29
    $region28: #{cnn_text_forward.1} parent=1 // pred_region
      %227 = vsyncadd [#allocation3], 0
      %s229 = sshll.u32 [#allocation2], 4
      %s230 = int_to_ptr.vmem [resolvable:$true] %s229
      %s231 = sshll.u32 %s6, 4
      %s232 = int_to_ptr.hbm [resolvable:$true] %s231
      %234 = dma.vmem_to_hbm [thread:$0]  %s230, 32, %s232, [#allocation3]
    $region29: #{cnn_text_forward.1} parent=1 // pred_fallthru
      _
    // Predicated region
    $region30: #{cnn_text_forward.1} parent=1 // pred_check
      _
    $region31: #{cnn_text_forward.1} parent=1 // pred_check_branch
      %236 = sbr.rel (0) target = $region33
    $region32: #{cnn_text_forward.1} parent=1 // pred_region
      %238 = dma.done [#allocation3], 32
    $region33: #{cnn_text_forward.1} parent=1 // pred_fallthru
      _
    %239 = vsyncpa [#allocation3], 1

</llo_original>
